<compile_context>
chip_gen: v6e
topology: v6e:2x2x1
jax: 0.10.0
libtpu: 0.0.40
codegen_flags: <defaults>
</compile_context>

<pallas_src>
import functools

import jax
import jax.numpy as jnp
from jax.experimental import pallas as pl
from jax.experimental.pallas import tpu as pltpu


def _sdp_kernel(q_ref, k_ref, v_ref, out_ref, attn_ref, *, inv_temperature):
    # Each grid step handles Bt heads: blocks are (Bt, D, F*).
    q = q_ref[...]  # (Bt, D, Fk)
    k = k_ref[...]  # (Bt, D, Fk)
    v = v_ref[...]  # (Bt, D, Fv)

    # scores = Q K^T / temperature, computed as a batched contraction of the
    # last axes (no explicit transpose), accumulated in f32 on the MXU.
    scores = jnp.einsum(
        "bqd,bkd->bqk", q, k, preferred_element_type=jnp.float32
    ) * inv_temperature  # (Bt, D, D)

    # Numerically-stable softmax over the last axis (dim=2 of [B, D, D]).
    m = jnp.max(scores, axis=-1, keepdims=True)
    e = jnp.exp(scores - m)
    denom = jnp.sum(e, axis=-1, keepdims=True)
    inv = pl.reciprocal(denom, approx=True)       # EUP, ~12-bit
    inv = inv * (2.0 - denom * inv)               # one Newton step -> ~f32
    attn = e * inv                                # (Bt, D, D), f32

    # Single cast of attn: reuse for both the write-back and the second dot.
    p = attn.astype(v.dtype)
    attn_ref[...] = p.astype(attn_ref.dtype) if attn_ref.dtype != p.dtype else p

    # output = attn @ V  -> (Bt, D, Fv)
    out = jnp.einsum("bqk,bkd->bqd", p, v, preferred_element_type=jnp.float32)
    out_ref[...] = out.astype(out_ref.dtype)


def _choose_block_b(B, D, Fk, Fv, itemsize=4):
    """Largest head-block Bt that divides B, keeps grid >= 2, and fits VMEM."""
    # Rough per-head VMEM footprint (q, k, v, out, scores, attn) in f32,
    # doubled for pipelining head-room.
    per_head = itemsize * (2 * D * Fk + 2 * D * Fv + 2 * D * D) * 2
    budget = 8 * 1024 * 1024  # stay well under the 16/32 MiB scoped defaults
    bt = max(1, min(B, budget // max(per_head, 1)))
    if B >= 2:
        bt = min(bt, max(1, B // 2))  # keep grid >= 2 for v7x megacore sharding
    while B % bt:
        bt -= 1
    return bt


def scaled_dot_production(query, key, value, temperature, *, block_b=None):
    """query, key: [B, D, Fk]; value: [B, D, Fv] ->
    (output [B, D, Fv], attn [B, D, D])."""
    B, D, Fk = query.shape
    _, _, Fv = value.shape
    assert key.shape == (B, D, Fk)
    assert value.shape[:2] == (B, D)

    bt = block_b if block_b is not None else _choose_block_b(B, D, Fk, Fv)
    assert B % bt == 0
    grid = (B // bt,)

    kernel = functools.partial(
        _sdp_kernel, inv_temperature=1.0 / float(temperature)
    )

    out_shapes = (
        jax.ShapeDtypeStruct((B, D, Fv), query.dtype),
        jax.ShapeDtypeStruct((B, D, D), query.dtype),
    )

    # Note: at these feature sizes (D=8, Fv=32) the output last dims are below
    # 128 lanes, so stores are masked; padding to 128 is not worthwhile at this
    # scale, but batching Bt heads per step removes most of the per-step cost.
    return pl.pallas_call(
        kernel,
        out_shape=out_shapes,
        grid_spec=pltpu.PrefetchScalarGridSpec(
            num_scalar_prefetch=0,
            grid=grid,
            in_specs=[
                pl.BlockSpec((bt, D, Fk), lambda b: (b, 0, 0)),
                pl.BlockSpec((bt, D, Fk), lambda b: (b, 0, 0)),
                pl.BlockSpec((bt, D, Fv), lambda b: (b, 0, 0)),
            ],
            out_specs=[
                pl.BlockSpec((bt, D, Fv), lambda b: (b, 0, 0)),
                pl.BlockSpec((bt, D, D), lambda b: (b, 0, 0)),
            ],
        ),
        compiler_params=pltpu.CompilerParams(
            dimension_semantics=("parallel",),
        ),
    )(query, key, value)


def _reference(query, key, value, temperature):
    attn = jnp.einsum("bdk,bek->bde", query, key) / temperature
    attn = jax.nn.softmax(attn, axis=2)
    out = jnp.einsum("bde,bef->bdf", attn, value)
    return out, attn


if __name__ == "__main__":
    # Small, deterministic shapes consistent with the module's docstring:
    # B = n_head * batch = 8, D = n_depth = 8, F = n_channel * d_features = 32.
    B, D, Fk, Fv = 8, 8, 32, 32
    temperature = float(Fk) ** 0.5

    key0 = jax.random.PRNGKey(0)
    kq, kk, kv = jax.random.split(key0, 3)
    query = jax.random.normal(kq, (B, D, Fk), dtype=jnp.float32)
    key_t = jax.random.normal(kk, (B, D, Fk), dtype=jnp.float32)
    value = jax.random.normal(kv, (B, D, Fv), dtype=jnp.float32)

    out, attn = scaled_dot_production(query, key_t, value, temperature)
    jax.block_until_ready((out, attn))

    ref_out, ref_attn = _reference(query, key_t, value, temperature)
    assert jnp.allclose(out, ref_out, atol=1e-4, rtol=1e-4)
    assert jnp.allclose(attn, ref_attn, atol=1e-4, rtol=1e-4)

    print("KERNEL_OK")
</pallas_src>

<mosaic_0001>
module attributes {stable_mosaic.version = 11 : i64} {
  func.func @_sdp_kernel(%arg0: i32, %arg1: memref<4x8x32xf32, #tpu.memory_space<vmem>>, %arg2: memref<4x8x32xf32, #tpu.memory_space<vmem>>, %arg3: memref<4x8x32xf32, #tpu.memory_space<vmem>>, %arg4: memref<4x8x32xf32, #tpu.memory_space<vmem>>, %arg5: memref<4x8x8xf32, #tpu.memory_space<vmem>>) attributes {dimension_semantics = [#tpu.dimension_semantics<parallel>], iteration_bounds = array<i64: 2>, scalar_prefetch = 0 : i64, scratch_operands = 0 : i64, tpu.core_type = #tpu.core_type<tc>, window_params = [{transform_indices = @transform_0, window_bounds = array<i64: 4, 8, 32>}, {transform_indices = @transform_1, window_bounds = array<i64: 4, 8, 32>}, {transform_indices = @transform_2, window_bounds = array<i64: 4, 8, 32>}, {transform_indices = @transform_3, window_bounds = array<i64: 4, 8, 32>}, {transform_indices = @transform_4, window_bounds = array<i64: 4, 8, 8>}]} {
    %c0 = arith.constant 0 : index
    %c0_0 = arith.constant 0 : index
    %c0_1 = arith.constant 0 : index
    %0 = vector.load %arg1[%c0, %c0_0, %c0_1] : memref<4x8x32xf32, #tpu.memory_space<vmem>>, vector<4x8x32xf32>
    %c0_2 = arith.constant 0 : index
    %c0_3 = arith.constant 0 : index
    %c0_4 = arith.constant 0 : index
    %1 = vector.load %arg2[%c0_2, %c0_3, %c0_4] : memref<4x8x32xf32, #tpu.memory_space<vmem>>, vector<4x8x32xf32>
    %c0_5 = arith.constant 0 : index
    %c0_6 = arith.constant 0 : index
    %c0_7 = arith.constant 0 : index
    %2 = vector.load %arg3[%c0_5, %c0_6, %c0_7] : memref<4x8x32xf32, #tpu.memory_space<vmem>>, vector<4x8x32xf32>
    "tpu.trace_start"() <{level = 10 : i32, message = "bqd,bkd->bqk"}> : () -> ()
    %cst = arith.constant dense<0.000000e+00> : vector<4x8x8xf32>
    %3 = tpu.matmul %0, %1, %cst {dimension_numbers = #tpu.dot_dimension_numbers<[2], [2], [1], [1], [0, 0, 0, 1, 1, 1], [0], [0]>} : vector<4x8x32xf32>, vector<4x8x32xf32>, vector<4x8x8xf32> -> vector<4x8x8xf32>
    "tpu.trace_stop"() : () -> ()
    %cst_8 = arith.constant 0.176776692 : f32
    %4 = vector.broadcast %cst_8 : f32 to vector<4x8x8xf32>
    %5 = arith.mulf %3, %4 : vector<4x8x8xf32>
    %cst_9 = arith.constant dense<0xFF800000> : vector<4x8xf32>
    %6 = vector.multi_reduction <maximumf>, %5, %cst_9 [2] : vector<4x8x8xf32> to vector<4x8xf32>
    %7 = vector.shape_cast %6 : vector<4x8xf32> to vector<4x8x1xf32>
    %8 = vector.broadcast %7 : vector<4x8x1xf32> to vector<4x8x8xf32>
    %9 = arith.subf %5, %8 : vector<4x8x8xf32>
    %10 = math.exp %9 : vector<4x8x8xf32>
    %cst_10 = arith.constant dense<0.000000e+00> : vector<4x8xf32>
    %11 = vector.multi_reduction <add>, %10, %cst_10 [2] : vector<4x8x8xf32> to vector<4x8xf32>
    %12 = vector.shape_cast %11 : vector<4x8xf32> to vector<4x8x1xf32>
    %13 = tpu.reciprocal %12 {approx = true} : vector<4x8x1xf32> -> vector<4x8x1xf32>
    %14 = arith.mulf %12, %13 : vector<4x8x1xf32>
    %cst_11 = arith.constant 2.000000e+00 : f32
    %15 = vector.broadcast %cst_11 : f32 to vector<4x8x1xf32>
    %16 = arith.subf %15, %14 : vector<4x8x1xf32>
    %17 = arith.mulf %13, %16 : vector<4x8x1xf32>
    %18 = vector.broadcast %17 : vector<4x8x1xf32> to vector<4x8x8xf32>
    %19 = arith.mulf %10, %18 : vector<4x8x8xf32>
    %c0_12 = arith.constant 0 : index
    %c0_13 = arith.constant 0 : index
    %c0_14 = arith.constant 0 : index
    %20 = vector.load %arg5[%c0_12, %c0_13, %c0_14] : memref<4x8x8xf32, #tpu.memory_space<vmem>>, vector<4x8x8xf32>
    tpu.vector_store %arg5[%c0_12, %c0_13, %c0_14], %19 {strides = array<i32>} : memref<4x8x8xf32, #tpu.memory_space<vmem>>, vector<4x8x8xf32>,
    "tpu.trace_start"() <{level = 10 : i32, message = "bqk,bkd->bqd"}> : () -> ()
    %cst_15 = arith.constant dense<0.000000e+00> : vector<4x8x32xf32>
    %21 = tpu.matmul %19, %2, %cst_15 {dimension_numbers = #tpu.dot_dimension_numbers<[2], [1], [1], [2], [0, 0, 0, 1, 1, 2], [0], [0]>} : vector<4x8x8xf32>, vector<4x8x32xf32>, vector<4x8x32xf32> -> vector<4x8x32xf32>
    "tpu.trace_stop"() : () -> ()
    %c0_16 = arith.constant 0 : index
    %c0_17 = arith.constant 0 : index
    %c0_18 = arith.constant 0 : index
    %22 = vector.load %arg4[%c0_16, %c0_17, %c0_18] : memref<4x8x32xf32, #tpu.memory_space<vmem>>, vector<4x8x32xf32>
    tpu.vector_store %arg4[%c0_16, %c0_17, %c0_18], %21 {strides = array<i32>} : memref<4x8x32xf32, #tpu.memory_space<vmem>>, vector<4x8x32xf32>,
    return
  }
  func.func @transform_0(%arg0: i32) -> (i32, i32, i32) {
    %c0_i32 = arith.constant 0 : i32
    %c0_i32_0 = arith.constant 0 : i32
    %c0_i32_1 = arith.constant 0 : i32
    return %arg0, %c0_i32, %c0_i32_0 : i32, i32, i32
  }
  func.func @transform_1(%arg0: i32) -> (i32, i32, i32) {
    %c0_i32 = arith.constant 0 : i32
    %c0_i32_0 = arith.constant 0 : i32
    %c0_i32_1 = arith.constant 0 : i32
    return %arg0, %c0_i32, %c0_i32_0 : i32, i32, i32
  }
  func.func @transform_2(%arg0: i32) -> (i32, i32, i32) {
    %c0_i32 = arith.constant 0 : i32
    %c0_i32_0 = arith.constant 0 : i32
    %c0_i32_1 = arith.constant 0 : i32
    return %arg0, %c0_i32, %c0_i32_0 : i32, i32, i32
  }
  func.func @transform_3(%arg0: i32) -> (i32, i32, i32) {
    %c0_i32 = arith.constant 0 : i32
    %c0_i32_0 = arith.constant 0 : i32
    %c0_i32_1 = arith.constant 0 : i32
    return %arg0, %c0_i32, %c0_i32_0 : i32, i32, i32
  }
  func.func @transform_4(%arg0: i32) -> (i32, i32, i32) {
    %c0_i32 = arith.constant 0 : i32
    %c0_i32_0 = arith.constant 0 : i32
    %c0_i32_1 = arith.constant 0 : i32
    return %arg0, %c0_i32, %c0_i32_0 : i32, i32, i32
  }
}

</mosaic_0001>

<llo_original>
// kernel: tpu_custom_call.1
$region0: #{tpu_custom_call.1}
  #allocation0 [shape = 'u32[]', space=smem, size = 0x4, offset = 0x4, fixed_abs, tag = 'smem constant byte address 0x4 - core index']
  #allocation1 [shape = 'u32[144,128]{1,0:T(1,128)}', space=vmem, size = 0x12000, scoped, tag = 'internal scratch']
  %s0 = inlined_call_operand.hbm [shape: f32[8,8,32], index: 0, kind: input, shape index: {}]
  %s1 = inlined_call_operand.hbm [shape: f32[8,8,32], index: 1, kind: input, shape index: {}]
  %s2 = inlined_call_operand.hbm [shape: f32[8,8,32], index: 2, kind: input, shape index: {}]
  %s3 = inlined_call_operand.hbm [shape: f32[8,8,32], index: 3, kind: output, shape index: {0}]
  %s4 = inlined_call_operand.hbm [shape: f32[8,8,8], index: 4, kind: output, shape index: {1}]
  %5 = xla_tuple %s3, %s4
  %s6 = sld [smem:[#allocation0]]
  $region65: #{tpu_custom_call.1} parent=0
    _
  %s8 = ssub.s32 1, %s6
  %s9 = scalar_select 0, %s8, %s6
  $region1: #{tpu_custom_call.1} parent=0
    #allocation2 [shape = 'u8[32768]{0}', space=vmem, size = 0x8000, scoped, tag = 'input window, operand 0']
    #allocation3 [shape = 's32[2]{0}', space=sflag, size = 0x8, scoped, tag = 'scoped memory for tpu_custom_call.1']
    #allocation4 [shape = 's32[2]{0}', space=sflag, size = 0x8, scoped, tag = 'scoped memory for tpu_custom_call.1']
    #allocation5 [shape = 'u8[32768]{0}', space=vmem, size = 0x8000, scoped, tag = 'input window, operand 1']
    #allocation6 [shape = 's32[2]{0}', space=sflag, size = 0x8, scoped, tag = 'scoped memory for tpu_custom_call.1']
    #allocation7 [shape = 'u8[32768]{0}', space=vmem, size = 0x8000, scoped, tag = 'input window, operand 2']
    #allocation8 [shape = 'u8[32768]{0}', space=vmem, size = 0x8000, scoped, tag = 'output window, operand 0']
    #allocation9 [shape = 'u8[32768]{0}', space=vmem, size = 0x8000, scoped, tag = 'output window, operand 1']
    #allocation10 [shape = 's32[2]{0}', space=sflag, size = 0x8, scoped, tag = 'scoped memory for tpu_custom_call.1']
    %10 = vsyncpa [#allocation3], 0
    %s11 = scalar_lea.sflag [#allocation3], 1
    %12 = vsyncpa %s11, 0
    %13 = vsyncpa [#allocation6], 0
    %s14 = scalar_lea.sflag [#allocation6], 1
    %15 = vsyncpa %s14, 0
    %16 = vsyncpa [#allocation4], 0
    %s17 = scalar_lea.sflag [#allocation4], 1
    %18 = vsyncpa %s17, 0
    %19 = vsyncpa [#allocation10], 0
    %s20 = scalar_lea.sflag [#allocation10], 1
    %21 = vsyncpa %s20, 0
    loop: start=0, step=1, limit=4
    $region2: #{tpu_custom_call.1} parent=1 // loop_pre_header
      _
    $region3: #{tpu_custom_call.1} parent=1 // loop_header
      %s23 = sphi 0, %s27
      %p24 = scmp.ge.s32.totalorder %s23, 4
      %s33 = sphi 0, %s35
      %s36 = sphi 0, %s33
      %s37 = sphi 0, %s36
      %s53 = sphi 0, %s37
      %s59 = sphi 0, %s61
      %s62 = sphi 0, %s59
      %s63 = sphi 0, %s62
      %s79 = sphi 0, %s63
      %s85 = sphi 0, %s87
      %s88 = sphi 0, %s85
      %s89 = sphi 0, %s88
      %s105 = sphi 0, %s89
      %s111 = sphi 0, %s113
      %s114 = sphi 0, %s111
      %s115 = sphi 0, %s114
      %s131 = sphi 0, %s115
      %s137 = sphi 0, %s139
      %s140 = sphi 0, %s137
      %s141 = sphi 0, %s140
      %s157 = sphi 0, %s141
    $region4: #{tpu_custom_call.1} parent=1 // loop_header_branch
      %26 = sbr.rel (%p24) target = $region8
    $region5: #{tpu_custom_call.1} parent=1 // loop_body
      %s28 = ssub.s32 %s23, 1
      %s29 = ssub.s32 %s23, 2
      %s30 = sadd.s32 %s23, 1
      %s31 = ssub.s32 %s23, %s30
      %p32 = scmp.eq.s32.totalorder %s31, 0
      %s34 = sadd.s32 %s33, 1
      %s35 = scalar_select %p32, %s33, %s34
      %p38 = pneg %p32
      %p39 = scmp.eq.s32.totalorder %s23, 1
      %p40 = por %p38, %p39
      %p41 = scmp.ne.s32.totalorder %s33, %s36
      %p42 = scmp.eq.s32.totalorder %s23, 0
      %p43 = por %p41, %p42
      %p44 = scmp.ne.s32.totalorder %s33, %s36
      %p45 = scmp.eq.s32.totalorder %s28, 1
      %p46 = por %p44, %p45
      %p47 = scmp.ne.s32.totalorder %s36, %s37
      %p48 = scmp.eq.s32.totalorder %s28, 0
      %p49 = por %p47, %p48
      %p50 = scmp.ne.s32.totalorder %s36, %s37
      %p51 = scmp.eq.s32.totalorder %s29, 1
      %p52 = por %p50, %p51
      %p54 = scmp.ne.s32.totalorder %s37, %s53
      %p55 = scmp.eq.s32.totalorder %s29, 0
      %p56 = por %p54, %p55
      %s57 = ssub.s32 %s23, %s30
      %p58 = scmp.eq.s32.totalorder %s57, 0
      %s60 = sadd.s32 %s59, 1
      %s61 = scalar_select %p58, %s59, %s60
      %p64 = pneg %p58
      %p65 = scmp.eq.s32.totalorder %s23, 1
      %p66 = por %p64, %p65
      %p67 = scmp.ne.s32.totalorder %s59, %s62
      %p68 = scmp.eq.s32.totalorder %s23, 0
      %p69 = por %p67, %p68
      %p70 = scmp.ne.s32.totalorder %s59, %s62
      %p71 = scmp.eq.s32.totalorder %s28, 1
      %p72 = por %p70, %p71
      %p73 = scmp.ne.s32.totalorder %s62, %s63
      %p74 = scmp.eq.s32.totalorder %s28, 0
      %p75 = por %p73, %p74
      %p76 = scmp.ne.s32.totalorder %s62, %s63
      %p77 = scmp.eq.s32.totalorder %s29, 1
      %p78 = por %p76, %p77
      %p80 = scmp.ne.s32.totalorder %s63, %s79
      %p81 = scmp.eq.s32.totalorder %s29, 0
      %p82 = por %p80, %p81
      %s83 = ssub.s32 %s23, %s30
      %p84 = scmp.eq.s32.totalorder %s83, 0
      %s86 = sadd.s32 %s85, 1
      %s87 = scalar_select %p84, %s85, %s86
      %p90 = pneg %p84
      %p91 = scmp.eq.s32.totalorder %s23, 1
      %p92 = por %p90, %p91
      %p93 = scmp.ne.s32.totalorder %s85, %s88
      %p94 = scmp.eq.s32.totalorder %s23, 0
      %p95 = por %p93, %p94
      %p96 = scmp.ne.s32.totalorder %s85, %s88
      %p97 = scmp.eq.s32.totalorder %s28, 1
      %p98 = por %p96, %p97
      %p99 = scmp.ne.s32.totalorder %s88, %s89
      %p100 = scmp.eq.s32.totalorder %s28, 0
      %p101 = por %p99, %p100
      %p102 = scmp.ne.s32.totalorder %s88, %s89
      %p103 = scmp.eq.s32.totalorder %s29, 1
      %p104 = por %p102, %p103
      %p106 = scmp.ne.s32.totalorder %s89, %s105
      %p107 = scmp.eq.s32.totalorder %s29, 0
      %p108 = por %p106, %p107
      %s109 = ssub.s32 %s23, %s30
      %p110 = scmp.eq.s32.totalorder %s109, 0
      %s112 = sadd.s32 %s111, 1
      %s113 = scalar_select %p110, %s111, %s112
      %p116 = pneg %p110
      %p117 = scmp.eq.s32.totalorder %s23, 1
      %p118 = por %p116, %p117
      %p119 = scmp.ne.s32.totalorder %s111, %s114
      %p120 = scmp.eq.s32.totalorder %s23, 0
      %p121 = por %p119, %p120
      %p122 = scmp.ne.s32.totalorder %s111, %s114
      %p123 = scmp.eq.s32.totalorder %s28, 1
      %p124 = por %p122, %p123
      %p125 = scmp.ne.s32.totalorder %s114, %s115
      %p126 = scmp.eq.s32.totalorder %s28, 0
      %p127 = por %p125, %p126
      %p128 = scmp.ne.s32.totalorder %s114, %s115
      %p129 = scmp.eq.s32.totalorder %s29, 1
      %p130 = por %p128, %p129
      %p132 = scmp.ne.s32.totalorder %s115, %s131
      %p133 = scmp.eq.s32.totalorder %s29, 0
      %p134 = por %p132, %p133
      %s135 = ssub.s32 %s23, %s30
      %p136 = scmp.eq.s32.totalorder %s135, 0
      %s138 = sadd.s32 %s137, 1
      %s139 = scalar_select %p136, %s137, %s138
      %p142 = pneg %p136
      %p143 = scmp.eq.s32.totalorder %s23, 1
      %p144 = por %p142, %p143
      %p145 = scmp.ne.s32.totalorder %s137, %s140
      %p146 = scmp.eq.s32.totalorder %s23, 0
      %p147 = por %p145, %p146
      %p148 = scmp.ne.s32.totalorder %s137, %s140
      %p149 = scmp.eq.s32.totalorder %s28, 1
      %p150 = por %p148, %p149
      %p151 = scmp.ne.s32.totalorder %s140, %s141
      %p152 = scmp.eq.s32.totalorder %s28, 0
      %p153 = por %p151, %p152
      %p154 = scmp.ne.s32.totalorder %s140, %s141
      %p155 = scmp.eq.s32.totalorder %s29, 1
      %p156 = por %p154, %p155
      %p158 = scmp.ne.s32.totalorder %s141, %s157
      %p159 = scmp.eq.s32.totalorder %s29, 0
      %p160 = por %p158, %p159
      %p161 = scmp.le.s32.totalorder 1, %s23
      %p162 = scmp.lt.s32.totalorder %s23, 3
      %p163 = pnand %p161, %p162
      %p164 = pneg %p163
      // Predicated region
      $region9: #{tpu_custom_call.1} parent=5 // pred_check
        _
      $region10: #{tpu_custom_call.1} parent=5 // pred_check_branch
        %166 = sbr.rel (%p163) target = $region12
      $region11: #{tpu_custom_call.1} parent=5 // pred_region
        %s167 = ssub.s32 %s23, 1
      $region12: #{tpu_custom_call.1} parent=5 // pred_fallthru
        _
      %p168 = scmp.lt.s32.totalorder %s23, 2
      // Predicated region
      $region13: #{tpu_custom_call.1} parent=5 // pred_check
        %p169 = pneg %p168
      $region14: #{tpu_custom_call.1} parent=5 // pred_check_branch
        %171 = sbr.rel (%p169) target = $region16
      $region15: #{tpu_custom_call.1} parent=5 // pred_region
        // Predicated region
        $region17: #{tpu_custom_call.1} parent=15 // pred_check
          %p172 = pneg %p43
        $region18: #{tpu_custom_call.1} parent=15 // pred_check_branch
          %174 = sbr.rel (%p172) target = $region20
        $region19: #{tpu_custom_call.1} parent=15 // pred_region
          %s175 = sand.u32 %s33, 1
          %s176 = scalar_lea.sflag [#allocation3], %s175
          %s177 = sand.u32 %s33, 1
          %s178 = smul.addr %s177, 32
          %s179 = scalar_lea.vmem [#allocation2], %s178
          %s180 = smul.u32 4, %s23
          %s182 = ssub.s32 512, 512
          %183 = vsyncadd %s176, %s182
          %s184 = smul.addr %s180, 128
          %s185 = scalar_lea.hbm %s0, %s184
          %s186 = sshll.u32 %s179, 4
          %s187 = int_to_ptr.vmem [resolvable:$true] %s186
          %192 = dma.hbm_to_vmem [thread:$0]  %s185, 512, %s187, %s176, 128, 128, 8
        $region20: #{tpu_custom_call.1} parent=15 // pred_fallthru
          _
        // Predicated region
        $region21: #{tpu_custom_call.1} parent=15 // pred_check
          %p193 = pneg %p69
        $region22: #{tpu_custom_call.1} parent=15 // pred_check_branch
          %195 = sbr.rel (%p193) target = $region24
        $region23: #{tpu_custom_call.1} parent=15 // pred_region
          %s196 = sand.u32 %s23, 1
          %s197 = scalar_lea.sflag [#allocation6], %s196
          %s198 = sand.u32 %s59, 1
          %s199 = smul.addr %s198, 32
          %s200 = scalar_lea.vmem [#allocation5], %s199
          %s201 = smul.u32 4, %s23
          %s203 = ssub.s32 512, 512
          %204 = vsyncadd %s197, %s203
          %s205 = smul.addr %s201, 128
          %s206 = scalar_lea.hbm %s1, %s205
          %s207 = sshll.u32 %s200, 4
          %s208 = int_to_ptr.vmem [resolvable:$true] %s207
          %213 = dma.hbm_to_vmem [thread:$0]  %s206, 512, %s208, %s197, 128, 128, 8
        $region24: #{tpu_custom_call.1} parent=15 // pred_fallthru
          _
        // Predicated region
        $region25: #{tpu_custom_call.1} parent=15 // pred_check
          %p214 = pneg %p95
        $region26: #{tpu_custom_call.1} parent=15 // pred_check_branch
          %216 = sbr.rel (%p214) target = $region28
        $region27: #{tpu_custom_call.1} parent=15 // pred_region
          %s217 = sand.u32 %s23, 1
          %s218 = scalar_lea.sflag [#allocation6], %s217
          %s219 = sand.u32 %s85, 1
          %s220 = smul.addr %s219, 32
          %s221 = scalar_lea.vmem [#allocation7], %s220
          %s222 = smul.u32 4, %s23
          %s224 = ssub.s32 512, 512
          %225 = vsyncadd %s218, %s224
          %s226 = smul.addr %s222, 128
          %s227 = scalar_lea.hbm %s2, %s226
          %s228 = sshll.u32 %s221, 4
          %s229 = int_to_ptr.vmem [resolvable:$true] %s228
          %234 = dma.hbm_to_vmem [thread:$0]  %s227, 512, %s229, %s218, 128, 128, 8
        $region28: #{tpu_custom_call.1} parent=15 // pred_fallthru
          _
      $region16: #{tpu_custom_call.1} parent=5 // pred_fallthru
        _
      %p235 = scmp.le.s32.totalorder 1, %s23
      %p236 = scmp.lt.s32.totalorder %s23, 3
      %p237 = pnand %p235, %p236
      %p238 = pneg %p237
      // Predicated region
      $region29: #{tpu_custom_call.1} parent=5 // pred_check
        _
      $region30: #{tpu_custom_call.1} parent=5 // pred_check_branch
        %240 = sbr.rel (%p237) target = $region32
      $region31: #{tpu_custom_call.1} parent=5 // pred_region
        %s241 = ssub.s32 %s23, 1
        %s242 = sand.u32 %s36, 1
        %s243 = scalar_lea.sflag [#allocation3], %s242
        %s244 = sand.u32 %s36, 1
        %s245 = smul.addr %s244, 32
        %s246 = scalar_lea.vmem [#allocation2], %s245
        // Predicated region
        $region33: #{tpu_custom_call.1} parent=31 // pred_check
          %p247 = pneg %p49
        $region34: #{tpu_custom_call.1} parent=31 // pred_check_branch
          %249 = sbr.rel (%p247) target = $region36
        $region35: #{tpu_custom_call.1} parent=31 // pred_region
          %250 = dma.done %s243, 512
        $region36: #{tpu_custom_call.1} parent=31 // pred_fallthru
          _
        %s251 = sand.u32 %s28, 1
        %s252 = scalar_lea.sflag [#allocation6], %s251
        %s253 = sand.u32 %s62, 1
        %s254 = smul.addr %s253, 32
        %s255 = scalar_lea.vmem [#allocation5], %s254
        // Predicated region
        $region37: #{tpu_custom_call.1} parent=31 // pred_check
          %p256 = pneg %p75
        $region38: #{tpu_custom_call.1} parent=31 // pred_check_branch
          %258 = sbr.rel (%p256) target = $region40
        $region39: #{tpu_custom_call.1} parent=31 // pred_region
          %259 = dma.done %s252, 512
        $region40: #{tpu_custom_call.1} parent=31 // pred_fallthru
          _
        %s260 = sand.u32 %s28, 1
        %s261 = scalar_lea.sflag [#allocation6], %s260
        %s262 = sand.u32 %s88, 1
        %s263 = smul.addr %s262, 32
        %s264 = scalar_lea.vmem [#allocation7], %s263
        // Predicated region
        $region41: #{tpu_custom_call.1} parent=31 // pred_check
          %p265 = pneg %p101
        $region42: #{tpu_custom_call.1} parent=31 // pred_check_branch
          %267 = sbr.rel (%p265) target = $region44
        $region43: #{tpu_custom_call.1} parent=31 // pred_region
          %268 = dma.done %s261, 512
        $region44: #{tpu_custom_call.1} parent=31 // pred_fallthru
          _
        %s269 = sand.u32 %s36, 1
        %s270 = scalar_lea.sflag [#allocation3], %s269
        %s271 = sand.u32 %s36, 1
        %s272 = smul.addr %s271, 32
        %s273 = scalar_lea.vmem [#allocation2], %s272
        %p274 = pneg %p49
        %p275 = pneg %p46
        %s276 = sand.u32 %s28, 1
        %s277 = scalar_lea.sflag [#allocation6], %s276
        %s278 = sand.u32 %s62, 1
        %s279 = smul.addr %s278, 32
        %s280 = scalar_lea.vmem [#allocation5], %s279
        %p281 = pneg %p75
        %p282 = pneg %p72
        %s283 = sand.u32 %s28, 1
        %s284 = scalar_lea.sflag [#allocation6], %s283
        %s285 = sand.u32 %s88, 1
        %s286 = smul.addr %s285, 32
        %s287 = scalar_lea.vmem [#allocation7], %s286
        %p288 = pneg %p101
        %p289 = pneg %p98
        %p290 = pneg %p127
        %p291 = pneg %p124
        %s292 = sand.u32 %s114, 1
        %s293 = scalar_lea.sflag [#allocation4], %s292
        %s294 = sand.u32 %s114, 1
        %s295 = smul.addr %s294, 32
        %s296 = scalar_lea.vmem [#allocation8], %s295
        %p297 = pneg %p153
        %p298 = pneg %p150
        %s299 = sand.u32 %s140, 1
        %s300 = scalar_lea.sflag [#allocation10], %s299
        %s301 = sand.u32 %s140, 1
        %s302 = smul.addr %s301, 32
        %s303 = scalar_lea.vmem [#allocation9], %s302
        %s304 = smul.u32 4, %s28
        %s305 = smul.u32 4, %s28
        %s306 = smul.u32 4, %s28
        %s307 = smul.u32 4, %s28
        %s308 = smul.u32 4, %s28
        %v309 = vld [vmem:[%s246] sm:$0xff]
        %v310 = vld [vmem:[%s246 + $0x8] sm:$0xff]
        %v311 = vld [vmem:[%s246 + $0x10] sm:$0xff]
        %v312 = vld [vmem:[%s246 + $0x18] sm:$0xff]
        %v313 = vld [vmem:[%s255] sm:$0xff]
        %v314 = vld [vmem:[%s255 + $0x8] sm:$0xff]
        %v315 = vld [vmem:[%s255 + $0x10] sm:$0xff]
        %v316 = vld [vmem:[%s255 + $0x18] sm:$0xff]
        %v317 = vld [vmem:[%s264] sm:$0xff]
        %v318 = vld [vmem:[%s264 + $0x8] sm:$0xff]
        %v319 = vld [vmem:[%s264 + $0x10] sm:$0xff]
        %v320 = vld [vmem:[%s264 + $0x18] sm:$0xff]
        %vm321 = vcmask 261120
        %v323 = vsel %vm321, %v309, 0
        %v326 = vsel %vm321, %v313, 0
        %328 = vmatprep.subr.mxu0 0.0
        %329 = vmatpush1.xpose.msra.mxu0 0.0
        %330 = vmatprep.subr.mxu0 0.0
        %331 = vmatpush1.xpose.msra.mxu0 0.0
        %332 = vmatprep.subr.mxu0 0.0
        %333 = vmatpush1.xpose.msra.mxu0 0.0
        %334 = vmatprep.subr.mxu0 0.0
        %335 = vmatpush1.xpose.msra.mxu0 0.0
        %336 = vmatprep.subr.mxu0 0.0
        %337 = vmatpush1.xpose.msra.mxu0 0.0
        %338 = vmatprep.subr.mxu0 0.0
        %339 = vmatpush1.xpose.msra.mxu0 0.0
        %340 = vmatprep.subr.mxu0 0.0
        %341 = vmatpush1.xpose.msra.mxu0 0.0
        %342 = vmatprep.subr.mxu0 0.0
        %343 = vmatpush1.xpose.msra.mxu0 0.0
        %344 = vmatprep.subr.mxu0 0.0
        %345 = vmatpush1.xpose.msra.mxu0 0.0
        %346 = vmatprep.subr.mxu0 0.0
        %347 = vmatpush1.xpose.msra.mxu0 0.0
        %348 = vmatprep.subr.mxu0 0.0
        %349 = vmatpush1.xpose.msra.mxu0 0.0
        %350 = vmatprep.subr.mxu0 0.0
        %351 = vmatpush1.xpose.msra.mxu0 0.0
        %352 = vmatprep.subr.mxu0 0.0
        %353 = vmatpush1.xpose.msra.mxu0 0.0
        %354 = vmatprep.subr.mxu0 0.0
        %355 = vmatpush1.xpose.msra.mxu0 0.0
        %356 = vmatprep.subr.mxu0 0.0
        %357 = vmatpush1.xpose.msra.mxu0 0.0
        %358 = vmatprep.subr.mxu0 0.0
        %359 = vmatpush1.xpose.msra.mxu0 %v326
        %360 = vmatprep.subr.mxu0 0.0
        %361 = vmatpush2.xpose.msra.mxu0 0.0
        %362 = vmatprep.subr.mxu0 0.0
        %363 = vmatpush2.xpose.msra.mxu0 0.0
        %364 = vmatprep.subr.mxu0 0.0
        %365 = vmatpush2.xpose.msra.mxu0 0.0
        %366 = vmatprep.subr.mxu0 0.0
        %367 = vmatpush2.xpose.msra.mxu0 0.0
        %368 = vmatprep.subr.mxu0 0.0
        %369 = vmatpush2.xpose.msra.mxu0 0.0
        %370 = vmatprep.subr.mxu0 0.0
        %371 = vmatpush2.xpose.msra.mxu0 0.0
        %372 = vmatprep.subr.mxu0 0.0
        %373 = vmatpush2.xpose.msra.mxu0 0.0
        %374 = vmatprep.subr.mxu0 0.0
        %375 = vmatpush2.xpose.msra.mxu0 0.0
        %376 = vmatprep.subr.mxu0 0.0
        %377 = vmatpush2.xpose.msra.mxu0 0.0
        %378 = vmatprep.subr.mxu0 0.0
        %379 = vmatpush2.xpose.msra.mxu0 0.0
        %380 = vmatprep.subr.mxu0 0.0
        %381 = vmatpush2.xpose.msra.mxu0 0.0
        %382 = vmatprep.subr.mxu0 0.0
        %383 = vmatpush2.xpose.msra.mxu0 0.0
        %384 = vmatprep.subr.mxu0 0.0
        %385 = vmatpush2.xpose.msra.mxu0 0.0
        %386 = vmatprep.subr.mxu0 0.0
        %387 = vmatpush2.xpose.msra.mxu0 0.0
        %388 = vmatprep.subr.mxu0 0.0
        %389 = vmatpush2.xpose.msra.mxu0 0.0
        %390 = vmatprep.subr.mxu0 0.0
        %391 = vmatpush2.xpose.msra.mxu0 0.0
        %392 = vmatprep.mubr.f32.mxu0 0.0
        %393 = vmatmul.mubr.f32.gmra.mxu0 %v323
        %v394 = vpop.f32.mrf.mxu0
        %v395 = vadd.f32 0.0, %v394
        %v396 = vpop.f32.mrf.mxu0
        %397 = vdwg.mxu0
        %v399 = vsel %vm321, %v310, 0
        %v402 = vsel %vm321, %v314, 0
        %404 = vmatprep.subr.mxu0 0.0
        %405 = vmatpush1.xpose.msra.mxu0 0.0
        %406 = vmatprep.subr.mxu0 0.0
        %407 = vmatpush1.xpose.msra.mxu0 0.0
        %408 = vmatprep.subr.mxu0 0.0
        %409 = vmatpush1.xpose.msra.mxu0 0.0
        %410 = vmatprep.subr.mxu0 0.0
        %411 = vmatpush1.xpose.msra.mxu0 0.0
        %412 = vmatprep.subr.mxu0 0.0
        %413 = vmatpush1.xpose.msra.mxu0 0.0
        %414 = vmatprep.subr.mxu0 0.0
        %415 = vmatpush1.xpose.msra.mxu0 0.0
        %416 = vmatprep.subr.mxu0 0.0
        %417 = vmatpush1.xpose.msra.mxu0 0.0
        %418 = vmatprep.subr.mxu0 0.0
        %419 = vmatpush1.xpose.msra.mxu0 0.0
        %420 = vmatprep.subr.mxu0 0.0
        %421 = vmatpush1.xpose.msra.mxu0 0.0
        %422 = vmatprep.subr.mxu0 0.0
        %423 = vmatpush1.xpose.msra.mxu0 0.0
        %424 = vmatprep.subr.mxu0 0.0
        %425 = vmatpush1.xpose.msra.mxu0 0.0
        %426 = vmatprep.subr.mxu0 0.0
        %427 = vmatpush1.xpose.msra.mxu0 0.0
        %428 = vmatprep.subr.mxu0 0.0
        %429 = vmatpush1.xpose.msra.mxu0 0.0
        %430 = vmatprep.subr.mxu0 0.0
        %431 = vmatpush1.xpose.msra.mxu0 0.0
        %432 = vmatprep.subr.mxu0 0.0
        %433 = vmatpush1.xpose.msra.mxu0 0.0
        %434 = vmatprep.subr.mxu0 0.0
        %435 = vmatpush1.xpose.msra.mxu0 %v402
        %436 = vmatprep.subr.mxu0 0.0
        %437 = vmatpush2.xpose.msra.mxu0 0.0
        %438 = vmatprep.subr.mxu0 0.0
        %439 = vmatpush2.xpose.msra.mxu0 0.0
        %440 = vmatprep.subr.mxu0 0.0
        %441 = vmatpush2.xpose.msra.mxu0 0.0
        %442 = vmatprep.subr.mxu0 0.0
        %443 = vmatpush2.xpose.msra.mxu0 0.0
        %444 = vmatprep.subr.mxu0 0.0
        %445 = vmatpush2.xpose.msra.mxu0 0.0
        %446 = vmatprep.subr.mxu0 0.0
        %447 = vmatpush2.xpose.msra.mxu0 0.0
        %448 = vmatprep.subr.mxu0 0.0
        %449 = vmatpush2.xpose.msra.mxu0 0.0
        %450 = vmatprep.subr.mxu0 0.0
        %451 = vmatpush2.xpose.msra.mxu0 0.0
        %452 = vmatprep.subr.mxu0 0.0
        %453 = vmatpush2.xpose.msra.mxu0 0.0
        %454 = vmatprep.subr.mxu0 0.0
        %455 = vmatpush2.xpose.msra.mxu0 0.0
        %456 = vmatprep.subr.mxu0 0.0
        %457 = vmatpush2.xpose.msra.mxu0 0.0
        %458 = vmatprep.subr.mxu0 0.0
        %459 = vmatpush2.xpose.msra.mxu0 0.0
        %460 = vmatprep.subr.mxu0 0.0
        %461 = vmatpush2.xpose.msra.mxu0 0.0
        %462 = vmatprep.subr.mxu0 0.0
        %463 = vmatpush2.xpose.msra.mxu0 0.0
        %464 = vmatprep.subr.mxu0 0.0
        %465 = vmatpush2.xpose.msra.mxu0 0.0
        %466 = vmatprep.subr.mxu0 0.0
        %467 = vmatpush2.xpose.msra.mxu0 0.0
        %468 = vmatprep.mubr.f32.mxu0 0.0
        %469 = vmatmul.mubr.f32.gmra.mxu0 %v399
        %v470 = vpop.f32.mrf.mxu0
        %v471 = vadd.f32 0.0, %v470
        %v472 = vpop.f32.mrf.mxu0
        %473 = vdwg.mxu0
        %v475 = vsel %vm321, %v311, 0
        %v478 = vsel %vm321, %v315, 0
        %480 = vmatprep.subr.mxu0 0.0
        %481 = vmatpush1.xpose.msra.mxu0 0.0
        %482 = vmatprep.subr.mxu0 0.0
        %483 = vmatpush1.xpose.msra.mxu0 0.0
        %484 = vmatprep.subr.mxu0 0.0
        %485 = vmatpush1.xpose.msra.mxu0 0.0
        %486 = vmatprep.subr.mxu0 0.0
        %487 = vmatpush1.xpose.msra.mxu0 0.0
        %488 = vmatprep.subr.mxu0 0.0
        %489 = vmatpush1.xpose.msra.mxu0 0.0
        %490 = vmatprep.subr.mxu0 0.0
        %491 = vmatpush1.xpose.msra.mxu0 0.0
        %492 = vmatprep.subr.mxu0 0.0
        %493 = vmatpush1.xpose.msra.mxu0 0.0
        %494 = vmatprep.subr.mxu0 0.0
        %495 = vmatpush1.xpose.msra.mxu0 0.0
        %496 = vmatprep.subr.mxu0 0.0
        %497 = vmatpush1.xpose.msra.mxu0 0.0
        %498 = vmatprep.subr.mxu0 0.0
        %499 = vmatpush1.xpose.msra.mxu0 0.0
        %500 = vmatprep.subr.mxu0 0.0
        %501 = vmatpush1.xpose.msra.mxu0 0.0
        %502 = vmatprep.subr.mxu0 0.0
        %503 = vmatpush1.xpose.msra.mxu0 0.0
        %504 = vmatprep.subr.mxu0 0.0
        %505 = vmatpush1.xpose.msra.mxu0 0.0
        %506 = vmatprep.subr.mxu0 0.0
        %507 = vmatpush1.xpose.msra.mxu0 0.0
        %508 = vmatprep.subr.mxu0 0.0
        %509 = vmatpush1.xpose.msra.mxu0 0.0
        %510 = vmatprep.subr.mxu0 0.0
        %511 = vmatpush1.xpose.msra.mxu0 %v478
        %512 = vmatprep.subr.mxu0 0.0
        %513 = vmatpush2.xpose.msra.mxu0 0.0
        %514 = vmatprep.subr.mxu0 0.0
        %515 = vmatpush2.xpose.msra.mxu0 0.0
        %516 = vmatprep.subr.mxu0 0.0
        %517 = vmatpush2.xpose.msra.mxu0 0.0
        %518 = vmatprep.subr.mxu0 0.0
        %519 = vmatpush2.xpose.msra.mxu0 0.0
        %520 = vmatprep.subr.mxu0 0.0
        %521 = vmatpush2.xpose.msra.mxu0 0.0
        %522 = vmatprep.subr.mxu0 0.0
        %523 = vmatpush2.xpose.msra.mxu0 0.0
        %524 = vmatprep.subr.mxu0 0.0
        %525 = vmatpush2.xpose.msra.mxu0 0.0
        %526 = vmatprep.subr.mxu0 0.0
        %527 = vmatpush2.xpose.msra.mxu0 0.0
        %528 = vmatprep.subr.mxu0 0.0
        %529 = vmatpush2.xpose.msra.mxu0 0.0
        %530 = vmatprep.subr.mxu0 0.0
        %531 = vmatpush2.xpose.msra.mxu0 0.0
        %532 = vmatprep.subr.mxu0 0.0
        %533 = vmatpush2.xpose.msra.mxu0 0.0
        %534 = vmatprep.subr.mxu0 0.0
        %535 = vmatpush2.xpose.msra.mxu0 0.0
        %536 = vmatprep.subr.mxu0 0.0
        %537 = vmatpush2.xpose.msra.mxu0 0.0
        %538 = vmatprep.subr.mxu0 0.0
        %539 = vmatpush2.xpose.msra.mxu0 0.0
        %540 = vmatprep.subr.mxu0 0.0
        %541 = vmatpush2.xpose.msra.mxu0 0.0
        %542 = vmatprep.subr.mxu0 0.0
        %543 = vmatpush2.xpose.msra.mxu0 0.0
        %544 = vmatprep.mubr.f32.mxu0 0.0
        %545 = vmatmul.mubr.f32.gmra.mxu0 %v475
        %v546 = vpop.f32.mrf.mxu0
        %v547 = vadd.f32 0.0, %v546
        %v548 = vpop.f32.mrf.mxu0
        %549 = vdwg.mxu0
        %v551 = vsel %vm321, %v312, 0
        %v554 = vsel %vm321, %v316, 0
        %556 = vmatprep.subr.mxu0 0.0
        %557 = vmatpush1.xpose.msra.mxu0 0.0
        %558 = vmatprep.subr.mxu0 0.0
        %559 = vmatpush1.xpose.msra.mxu0 0.0
        %560 = vmatprep.subr.mxu0 0.0
        %561 = vmatpush1.xpose.msra.mxu0 0.0
        %562 = vmatprep.subr.mxu0 0.0
        %563 = vmatpush1.xpose.msra.mxu0 0.0
        %564 = vmatprep.subr.mxu0 0.0
        %565 = vmatpush1.xpose.msra.mxu0 0.0
        %566 = vmatprep.subr.mxu0 0.0
        %567 = vmatpush1.xpose.msra.mxu0 0.0
        %568 = vmatprep.subr.mxu0 0.0
        %569 = vmatpush1.xpose.msra.mxu0 0.0
        %570 = vmatprep.subr.mxu0 0.0
        %571 = vmatpush1.xpose.msra.mxu0 0.0
        %572 = vmatprep.subr.mxu0 0.0
        %573 = vmatpush1.xpose.msra.mxu0 0.0
        %574 = vmatprep.subr.mxu0 0.0
        %575 = vmatpush1.xpose.msra.mxu0 0.0
        %576 = vmatprep.subr.mxu0 0.0
        %577 = vmatpush1.xpose.msra.mxu0 0.0
        %578 = vmatprep.subr.mxu0 0.0
        %579 = vmatpush1.xpose.msra.mxu0 0.0
        %580 = vmatprep.subr.mxu0 0.0
        %581 = vmatpush1.xpose.msra.mxu0 0.0
        %582 = vmatprep.subr.mxu0 0.0
        %583 = vmatpush1.xpose.msra.mxu0 0.0
        %584 = vmatprep.subr.mxu0 0.0
        %585 = vmatpush1.xpose.msra.mxu0 0.0
        %586 = vmatprep.subr.mxu0 0.0
        %587 = vmatpush1.xpose.msra.mxu0 %v554
        %588 = vmatprep.subr.mxu0 0.0
        %589 = vmatpush2.xpose.msra.mxu0 0.0
        %590 = vmatprep.subr.mxu0 0.0
        %591 = vmatpush2.xpose.msra.mxu0 0.0
        %592 = vmatprep.subr.mxu0 0.0
        %593 = vmatpush2.xpose.msra.mxu0 0.0
        %594 = vmatprep.subr.mxu0 0.0
        %595 = vmatpush2.xpose.msra.mxu0 0.0
        %596 = vmatprep.subr.mxu0 0.0
        %597 = vmatpush2.xpose.msra.mxu0 0.0
        %598 = vmatprep.subr.mxu0 0.0
        %599 = vmatpush2.xpose.msra.mxu0 0.0
        %600 = vmatprep.subr.mxu0 0.0
        %601 = vmatpush2.xpose.msra.mxu0 0.0
        %602 = vmatprep.subr.mxu0 0.0
        %603 = vmatpush2.xpose.msra.mxu0 0.0
        %604 = vmatprep.subr.mxu0 0.0
        %605 = vmatpush2.xpose.msra.mxu0 0.0
        %606 = vmatprep.subr.mxu0 0.0
        %607 = vmatpush2.xpose.msra.mxu0 0.0
        %608 = vmatprep.subr.mxu0 0.0
        %609 = vmatpush2.xpose.msra.mxu0 0.0
        %610 = vmatprep.subr.mxu0 0.0
        %611 = vmatpush2.xpose.msra.mxu0 0.0
        %612 = vmatprep.subr.mxu0 0.0
        %613 = vmatpush2.xpose.msra.mxu0 0.0
        %614 = vmatprep.subr.mxu0 0.0
        %615 = vmatpush2.xpose.msra.mxu0 0.0
        %616 = vmatprep.subr.mxu0 0.0
        %617 = vmatpush2.xpose.msra.mxu0 0.0
        %618 = vmatprep.subr.mxu0 0.0
        %619 = vmatpush2.xpose.msra.mxu0 0.0
        %620 = vmatprep.mubr.f32.mxu0 0.0
        %621 = vmatmul.mubr.f32.gmra.mxu0 %v551
        %v622 = vpop.f32.mrf.mxu0
        %v623 = vadd.f32 0.0, %v622
        %v624 = vpop.f32.mrf.mxu0
        %625 = vdwg.mxu0
        %v626 = vmul.f32 %v395, 0.17677669
        %v627 = vmul.f32 %v471, 0.17677669
        %v628 = vmul.f32 %v547, 0.17677669
        %v629 = vmul.f32 %v623, 0.17677669
        %vm630 = vcmask 64512
        %v631 = vsel %vm630, %v626, -inf
        %632 = vmax.xlane.f32.xlu0 %v631
        %v633 = vpop.xlane.xlu0 %632
        %v634 = vsel %vm630, %v627, -inf
        %635 = vmax.xlane.f32.xlu0 %v634
        %v636 = vpop.xlane.xlu0 %635
        %v637 = vsel %vm630, %v628, -inf
        %638 = vmax.xlane.f32.xlu0 %v637
        %v639 = vpop.xlane.xlu0 %638
        %v640 = vsel %vm630, %v629, -inf
        %641 = vmax.xlane.f32.xlu0 %v640
        %v642 = vpop.xlane.xlu0 %641
        %v643 = vsub.f32 %v626, %v633
        %v644 = vsub.f32 %v627, %v636
        %v645 = vsub.f32 %v628, %v639
        %v646 = vsub.f32 %v629, %v642
        %v647 = vmul.f32 %v643, 1.442695
        %v648 = vpow.pop %v647
        %v649 = vmul.f32 %v644, 1.442695
        %v650 = vpow.pop %v649
        %v651 = vmul.f32 %v645, 1.442695
        %v652 = vpow.pop %v651
        %v653 = vmul.f32 %v646, 1.442695
        %v654 = vpow.pop %v653
        %v655 = vsel %vm630, %v648, 0.0
        %656 = vadd.xlane.f32.xlu0 %v655
        %v657 = vpop.xlane.xlu0 %656
        %v658 = vsel %vm630, %v650, 0.0
        %659 = vadd.xlane.f32.xlu0 %v658
        %v660 = vpop.xlane.xlu0 %659
        %v661 = vsel %vm630, %v652, 0.0
        %662 = vadd.xlane.f32.xlu0 %v661
        %v663 = vpop.xlane.xlu0 %662
        %v664 = vsel %vm630, %v654, 0.0
        %665 = vadd.xlane.f32.xlu0 %v664
        %v666 = vpop.xlane.xlu0 %665
        %v667 = vrcp.pop %v657
        %v668 = vrcp.pop %v660
        %v669 = vrcp.pop %v663
        %v670 = vrcp.pop %v666
        %v671 = vmul.f32 %v657, %v667
        %v672 = vmul.f32 %v660, %v668
        %v673 = vmul.f32 %v663, %v669
        %v674 = vmul.f32 %v666, %v670
        %v675 = vsub.f32 2.0, %v671
        %v676 = vsub.f32 2.0, %v672
        %v677 = vsub.f32 2.0, %v673
        %v678 = vsub.f32 2.0, %v674
        %v679 = vmul.f32 %v667, %v675
        %v680 = vmul.f32 %v668, %v676
        %v681 = vmul.f32 %v669, %v677
        %v682 = vmul.f32 %v670, %v678
        %v683 = vmul.f32 %v648, %v679
        %v684 = vmul.f32 %v650, %v680
        %v685 = vmul.f32 %v652, %v681
        %v686 = vmul.f32 %v654, %v682
        %687 = vst.msk [vmem:[%s303] sm:$0xff] %vm630, %v683
        %688 = vst.msk [vmem:[%s303 + $0x8] sm:$0xff] %vm630, %v684
        %689 = vst.msk [vmem:[%s303 + $0x10] sm:$0xff] %vm630, %v685
        %690 = vst.msk [vmem:[%s303 + $0x18] sm:$0xff] %vm630, %v686
        %v692 = vsel %vm630, %v683, 0
        %694 = vmatprep.subr.mxu0 0.0
        %695 = vmatpush1.msra.mxu0 0.0
        %696 = vmatprep.subr.mxu0 0.0
        %697 = vmatpush1.msra.mxu0 0.0
        %698 = vmatprep.subr.mxu0 0.0
        %699 = vmatpush1.msra.mxu0 0.0
        %700 = vmatprep.subr.mxu0 0.0
        %701 = vmatpush1.msra.mxu0 0.0
        %702 = vmatprep.subr.mxu0 0.0
        %703 = vmatpush1.msra.mxu0 0.0
        %704 = vmatprep.subr.mxu0 0.0
        %705 = vmatpush1.msra.mxu0 0.0
        %706 = vmatprep.subr.mxu0 0.0
        %707 = vmatpush1.msra.mxu0 0.0
        %708 = vmatprep.subr.mxu0 0.0
        %709 = vmatpush1.msra.mxu0 0.0
        %710 = vmatprep.subr.mxu0 0.0
        %711 = vmatpush1.msra.mxu0 0.0
        %712 = vmatprep.subr.mxu0 0.0
        %713 = vmatpush1.msra.mxu0 0.0
        %714 = vmatprep.subr.mxu0 0.0
        %715 = vmatpush1.msra.mxu0 0.0
        %716 = vmatprep.subr.mxu0 0.0
        %717 = vmatpush1.msra.mxu0 0.0
        %718 = vmatprep.subr.mxu0 0.0
        %719 = vmatpush1.msra.mxu0 0.0
        %720 = vmatprep.subr.mxu0 0.0
        %721 = vmatpush1.msra.mxu0 0.0
        %722 = vmatprep.subr.mxu0 0.0
        %723 = vmatpush1.msra.mxu0 0.0
        %724 = vmatprep.subr.mxu0 0.0
        %725 = vmatpush1.msra.mxu0 %v317
        %726 = vmatprep.subr.mxu0 0.0
        %727 = vmatpush2.msra.mxu0 0.0
        %728 = vmatprep.subr.mxu0 0.0
        %729 = vmatpush2.msra.mxu0 0.0
        %730 = vmatprep.subr.mxu0 0.0
        %731 = vmatpush2.msra.mxu0 0.0
        %732 = vmatprep.subr.mxu0 0.0
        %733 = vmatpush2.msra.mxu0 0.0
        %734 = vmatprep.subr.mxu0 0.0
        %735 = vmatpush2.msra.mxu0 0.0
        %736 = vmatprep.subr.mxu0 0.0
        %737 = vmatpush2.msra.mxu0 0.0
        %738 = vmatprep.subr.mxu0 0.0
        %739 = vmatpush2.msra.mxu0 0.0
        %740 = vmatprep.subr.mxu0 0.0
        %741 = vmatpush2.msra.mxu0 0.0
        %742 = vmatprep.subr.mxu0 0.0
        %743 = vmatpush2.msra.mxu0 0.0
        %744 = vmatprep.subr.mxu0 0.0
        %745 = vmatpush2.msra.mxu0 0.0
        %746 = vmatprep.subr.mxu0 0.0
        %747 = vmatpush2.msra.mxu0 0.0
        %748 = vmatprep.subr.mxu0 0.0
        %749 = vmatpush2.msra.mxu0 0.0
        %750 = vmatprep.subr.mxu0 0.0
        %751 = vmatpush2.msra.mxu0 0.0
        %752 = vmatprep.subr.mxu0 0.0
        %753 = vmatpush2.msra.mxu0 0.0
        %754 = vmatprep.subr.mxu0 0.0
        %755 = vmatpush2.msra.mxu0 0.0
        %756 = vmatprep.subr.mxu0 0.0
        %757 = vmatpush2.msra.mxu0 0.0
        %758 = vmatprep.mubr.f32.mxu0 0.0
        %759 = vmatmul.mubr.f32.gmra.mxu0 %v692
        %v760 = vpop.f32.mrf.mxu0
        %v761 = vadd.f32 0.0, %v760
        %v762 = vpop.f32.mrf.mxu0
        %763 = vdwg.mxu0
        %v765 = vsel %vm630, %v684, 0
        %767 = vmatprep.subr.mxu0 0.0
        %768 = vmatpush1.msra.mxu0 0.0
        %769 = vmatprep.subr.mxu0 0.0
        %770 = vmatpush1.msra.mxu0 0.0
        %771 = vmatprep.subr.mxu0 0.0
        %772 = vmatpush1.msra.mxu0 0.0
        %773 = vmatprep.subr.mxu0 0.0
        %774 = vmatpush1.msra.mxu0 0.0
        %775 = vmatprep.subr.mxu0 0.0
        %776 = vmatpush1.msra.mxu0 0.0
        %777 = vmatprep.subr.mxu0 0.0
        %778 = vmatpush1.msra.mxu0 0.0
        %779 = vmatprep.subr.mxu0 0.0
        %780 = vmatpush1.msra.mxu0 0.0
        %781 = vmatprep.subr.mxu0 0.0
        %782 = vmatpush1.msra.mxu0 0.0
        %783 = vmatprep.subr.mxu0 0.0
        %784 = vmatpush1.msra.mxu0 0.0
        %785 = vmatprep.subr.mxu0 0.0
        %786 = vmatpush1.msra.mxu0 0.0
        %787 = vmatprep.subr.mxu0 0.0
        %788 = vmatpush1.msra.mxu0 0.0
        %789 = vmatprep.subr.mxu0 0.0
        %790 = vmatpush1.msra.mxu0 0.0
        %791 = vmatprep.subr.mxu0 0.0
        %792 = vmatpush1.msra.mxu0 0.0
        %793 = vmatprep.subr.mxu0 0.0
        %794 = vmatpush1.msra.mxu0 0.0
        %795 = vmatprep.subr.mxu0 0.0
        %796 = vmatpush1.msra.mxu0 0.0
        %797 = vmatprep.subr.mxu0 0.0
        %798 = vmatpush1.msra.mxu0 %v318
        %799 = vmatprep.subr.mxu0 0.0
        %800 = vmatpush2.msra.mxu0 0.0
        %801 = vmatprep.subr.mxu0 0.0
        %802 = vmatpush2.msra.mxu0 0.0
        %803 = vmatprep.subr.mxu0 0.0
        %804 = vmatpush2.msra.mxu0 0.0
        %805 = vmatprep.subr.mxu0 0.0
        %806 = vmatpush2.msra.mxu0 0.0
        %807 = vmatprep.subr.mxu0 0.0
        %808 = vmatpush2.msra.mxu0 0.0
        %809 = vmatprep.subr.mxu0 0.0
        %810 = vmatpush2.msra.mxu0 0.0
        %811 = vmatprep.subr.mxu0 0.0
        %812 = vmatpush2.msra.mxu0 0.0
        %813 = vmatprep.subr.mxu0 0.0
        %814 = vmatpush2.msra.mxu0 0.0
        %815 = vmatprep.subr.mxu0 0.0
        %816 = vmatpush2.msra.mxu0 0.0
        %817 = vmatprep.subr.mxu0 0.0
        %818 = vmatpush2.msra.mxu0 0.0
        %819 = vmatprep.subr.mxu0 0.0
        %820 = vmatpush2.msra.mxu0 0.0
        %821 = vmatprep.subr.mxu0 0.0
        %822 = vmatpush2.msra.mxu0 0.0
        %823 = vmatprep.subr.mxu0 0.0
        %824 = vmatpush2.msra.mxu0 0.0
        %825 = vmatprep.subr.mxu0 0.0
        %826 = vmatpush2.msra.mxu0 0.0
        %827 = vmatprep.subr.mxu0 0.0
        %828 = vmatpush2.msra.mxu0 0.0
        %829 = vmatprep.subr.mxu0 0.0
        %830 = vmatpush2.msra.mxu0 0.0
        %831 = vmatprep.mubr.f32.mxu0 0.0
        %832 = vmatmul.mubr.f32.gmra.mxu0 %v765
        %v833 = vpop.f32.mrf.mxu0
        %v834 = vadd.f32 0.0, %v833
        %v835 = vpop.f32.mrf.mxu0
        %836 = vdwg.mxu0
        %v838 = vsel %vm630, %v685, 0
        %840 = vmatprep.subr.mxu0 0.0
        %841 = vmatpush1.msra.mxu0 0.0
        %842 = vmatprep.subr.mxu0 0.0
        %843 = vmatpush1.msra.mxu0 0.0
        %844 = vmatprep.subr.mxu0 0.0
        %845 = vmatpush1.msra.mxu0 0.0
        %846 = vmatprep.subr.mxu0 0.0
        %847 = vmatpush1.msra.mxu0 0.0
        %848 = vmatprep.subr.mxu0 0.0
        %849 = vmatpush1.msra.mxu0 0.0
        %850 = vmatprep.subr.mxu0 0.0
        %851 = vmatpush1.msra.mxu0 0.0
        %852 = vmatprep.subr.mxu0 0.0
        %853 = vmatpush1.msra.mxu0 0.0
        %854 = vmatprep.subr.mxu0 0.0
        %855 = vmatpush1.msra.mxu0 0.0
        %856 = vmatprep.subr.mxu0 0.0
        %857 = vmatpush1.msra.mxu0 0.0
        %858 = vmatprep.subr.mxu0 0.0
        %859 = vmatpush1.msra.mxu0 0.0
        %860 = vmatprep.subr.mxu0 0.0
        %861 = vmatpush1.msra.mxu0 0.0
        %862 = vmatprep.subr.mxu0 0.0
        %863 = vmatpush1.msra.mxu0 0.0
        %864 = vmatprep.subr.mxu0 0.0
        %865 = vmatpush1.msra.mxu0 0.0
        %866 = vmatprep.subr.mxu0 0.0
        %867 = vmatpush1.msra.mxu0 0.0
        %868 = vmatprep.subr.mxu0 0.0
        %869 = vmatpush1.msra.mxu0 0.0
        %870 = vmatprep.subr.mxu0 0.0
        %871 = vmatpush1.msra.mxu0 %v319
        %872 = vmatprep.subr.mxu0 0.0
        %873 = vmatpush2.msra.mxu0 0.0
        %874 = vmatprep.subr.mxu0 0.0
        %875 = vmatpush2.msra.mxu0 0.0
        %876 = vmatprep.subr.mxu0 0.0
        %877 = vmatpush2.msra.mxu0 0.0
        %878 = vmatprep.subr.mxu0 0.0
        %879 = vmatpush2.msra.mxu0 0.0
        %880 = vmatprep.subr.mxu0 0.0
        %881 = vmatpush2.msra.mxu0 0.0
        %882 = vmatprep.subr.mxu0 0.0
        %883 = vmatpush2.msra.mxu0 0.0
        %884 = vmatprep.subr.mxu0 0.0
        %885 = vmatpush2.msra.mxu0 0.0
        %886 = vmatprep.subr.mxu0 0.0
        %887 = vmatpush2.msra.mxu0 0.0
        %888 = vmatprep.subr.mxu0 0.0
        %889 = vmatpush2.msra.mxu0 0.0
        %890 = vmatprep.subr.mxu0 0.0
        %891 = vmatpush2.msra.mxu0 0.0
        %892 = vmatprep.subr.mxu0 0.0
        %893 = vmatpush2.msra.mxu0 0.0
        %894 = vmatprep.subr.mxu0 0.0
        %895 = vmatpush2.msra.mxu0 0.0
        %896 = vmatprep.subr.mxu0 0.0
        %897 = vmatpush2.msra.mxu0 0.0
        %898 = vmatprep.subr.mxu0 0.0
        %899 = vmatpush2.msra.mxu0 0.0
        %900 = vmatprep.subr.mxu0 0.0
        %901 = vmatpush2.msra.mxu0 0.0
        %902 = vmatprep.subr.mxu0 0.0
        %903 = vmatpush2.msra.mxu0 0.0
        %904 = vmatprep.mubr.f32.mxu0 0.0
        %905 = vmatmul.mubr.f32.gmra.mxu0 %v838
        %v906 = vpop.f32.mrf.mxu0
        %v907 = vadd.f32 0.0, %v906
        %v908 = vpop.f32.mrf.mxu0
        %909 = vdwg.mxu0
        %v911 = vsel %vm630, %v686, 0
        %913 = vmatprep.subr.mxu0 0.0
        %914 = vmatpush1.msra.mxu0 0.0
        %915 = vmatprep.subr.mxu0 0.0
        %916 = vmatpush1.msra.mxu0 0.0
        %917 = vmatprep.subr.mxu0 0.0
        %918 = vmatpush1.msra.mxu0 0.0
        %919 = vmatprep.subr.mxu0 0.0
        %920 = vmatpush1.msra.mxu0 0.0
        %921 = vmatprep.subr.mxu0 0.0
        %922 = vmatpush1.msra.mxu0 0.0
        %923 = vmatprep.subr.mxu0 0.0
        %924 = vmatpush1.msra.mxu0 0.0
        %925 = vmatprep.subr.mxu0 0.0
        %926 = vmatpush1.msra.mxu0 0.0
        %927 = vmatprep.subr.mxu0 0.0
        %928 = vmatpush1.msra.mxu0 0.0
        %929 = vmatprep.subr.mxu0 0.0
        %930 = vmatpush1.msra.mxu0 0.0
        %931 = vmatprep.subr.mxu0 0.0
        %932 = vmatpush1.msra.mxu0 0.0
        %933 = vmatprep.subr.mxu0 0.0
        %934 = vmatpush1.msra.mxu0 0.0
        %935 = vmatprep.subr.mxu0 0.0
        %936 = vmatpush1.msra.mxu0 0.0
        %937 = vmatprep.subr.mxu0 0.0
        %938 = vmatpush1.msra.mxu0 0.0
        %939 = vmatprep.subr.mxu0 0.0
        %940 = vmatpush1.msra.mxu0 0.0
        %941 = vmatprep.subr.mxu0 0.0
        %942 = vmatpush1.msra.mxu0 0.0
        %943 = vmatprep.subr.mxu0 0.0
        %944 = vmatpush1.msra.mxu0 %v320
        %945 = vmatprep.subr.mxu0 0.0
        %946 = vmatpush2.msra.mxu0 0.0
        %947 = vmatprep.subr.mxu0 0.0
        %948 = vmatpush2.msra.mxu0 0.0
        %949 = vmatprep.subr.mxu0 0.0
        %950 = vmatpush2.msra.mxu0 0.0
        %951 = vmatprep.subr.mxu0 0.0
        %952 = vmatpush2.msra.mxu0 0.0
        %953 = vmatprep.subr.mxu0 0.0
        %954 = vmatpush2.msra.mxu0 0.0
        %955 = vmatprep.subr.mxu0 0.0
        %956 = vmatpush2.msra.mxu0 0.0
        %957 = vmatprep.subr.mxu0 0.0
        %958 = vmatpush2.msra.mxu0 0.0
        %959 = vmatprep.subr.mxu0 0.0
        %960 = vmatpush2.msra.mxu0 0.0
        %961 = vmatprep.subr.mxu0 0.0
        %962 = vmatpush2.msra.mxu0 0.0
        %963 = vmatprep.subr.mxu0 0.0
        %964 = vmatpush2.msra.mxu0 0.0
        %965 = vmatprep.subr.mxu0 0.0
        %966 = vmatpush2.msra.mxu0 0.0
        %967 = vmatprep.subr.mxu0 0.0
        %968 = vmatpush2.msra.mxu0 0.0
        %969 = vmatprep.subr.mxu0 0.0
        %970 = vmatpush2.msra.mxu0 0.0
        %971 = vmatprep.subr.mxu0 0.0
        %972 = vmatpush2.msra.mxu0 0.0
        %973 = vmatprep.subr.mxu0 0.0
        %974 = vmatpush2.msra.mxu0 0.0
        %975 = vmatprep.subr.mxu0 0.0
        %976 = vmatpush2.msra.mxu0 0.0
        %977 = vmatprep.mubr.f32.mxu0 0.0
        %978 = vmatmul.mubr.f32.gmra.mxu0 %v911
        %v979 = vpop.f32.mrf.mxu0
        %v980 = vadd.f32 0.0, %v979
        %v981 = vpop.f32.mrf.mxu0
        %982 = vdwg.mxu0
        %983 = vst.msk [vmem:[%s296] sm:$0xff] %vm321, %v761
        %984 = vst.msk [vmem:[%s296 + $0x8] sm:$0xff] %vm321, %v834
        %985 = vst.msk [vmem:[%s296 + $0x10] sm:$0xff] %vm321, %v907
        %986 = vst.msk [vmem:[%s296 + $0x18] sm:$0xff] %vm321, %v980
        %s987 = sand.u32 %s114, 1
        %s988 = scalar_lea.sflag [#allocation4], %s987
        %s989 = sand.u32 %s114, 1
        %s990 = smul.addr %s989, 32
        %s991 = scalar_lea.vmem [#allocation8], %s990
        %s992 = sand.u32 %s140, 1
        %s993 = scalar_lea.sflag [#allocation10], %s992
        %s994 = sand.u32 %s140, 1
        %s995 = smul.addr %s994, 32
        %s996 = scalar_lea.vmem [#allocation9], %s995
        // Predicated region
        $region45: #{tpu_custom_call.1} parent=31 // pred_check
          %p997 = pneg %p124
        $region46: #{tpu_custom_call.1} parent=31 // pred_check_branch
          %999 = sbr.rel (%p997) target = $region48
        $region47: #{tpu_custom_call.1} parent=31 // pred_region
          %s1000 = smul.u32 4, %s28
          %s1002 = ssub.s32 512, 512
          %1003 = vsyncadd %s988, %s1002
          %s1004 = smul.addr %s1000, 128
          %s1005 = scalar_lea.hbm %s3, %s1004
          %s1006 = sshll.u32 %s991, 4
          %s1007 = int_to_ptr.vmem [resolvable:$true] %s1006
          %1012 = dma.vmem_to_hbm [thread:$0]  %s1007, 512, %s1005, %s988, 128, 128, 8
        $region48: #{tpu_custom_call.1} parent=31 // pred_fallthru
          _
        // Predicated region
        $region49: #{tpu_custom_call.1} parent=31 // pred_check
          %p1013 = pneg %p150
        $region50: #{tpu_custom_call.1} parent=31 // pred_check_branch
          %1015 = sbr.rel (%p1013) target = $region52
        $region51: #{tpu_custom_call.1} parent=31 // pred_region
          %s1016 = smul.u32 4, %s28
          %s1018 = ssub.s32 512, 512
          %1019 = vsyncadd %s993, %s1018
          %s1020 = smul.addr %s1016, 128
          %s1021 = scalar_lea.hbm %s4, %s1020
          %s1022 = sshll.u32 %s996, 4
          %s1023 = int_to_ptr.vmem [resolvable:$true] %s1022
          %1028 = dma.vmem_to_hbm [thread:$0]  %s1023, 512, %s1021, %s993, 128, 128, 8
        $region52: #{tpu_custom_call.1} parent=31 // pred_fallthru
          _
      $region32: #{tpu_custom_call.1} parent=5 // pred_fallthru
        _
      %p1029 = scmp.le.s32.totalorder 2, %s23
      // Predicated region
      $region53: #{tpu_custom_call.1} parent=5 // pred_check
        %p1030 = pneg %p1029
      $region54: #{tpu_custom_call.1} parent=5 // pred_check_branch
        %1032 = sbr.rel (%p1030) target = $region56
      $region55: #{tpu_custom_call.1} parent=5 // pred_region
        %s1033 = ssub.s32 %s23, 2
        // Predicated region
        $region57: #{tpu_custom_call.1} parent=55 // pred_check
          %p1034 = pneg %p130
        $region58: #{tpu_custom_call.1} parent=55 // pred_check_branch
          %1036 = sbr.rel (%p1034) target = $region60
        $region59: #{tpu_custom_call.1} parent=55 // pred_region
          %s1037 = sand.u32 %s115, 1
          %s1038 = scalar_lea.sflag [#allocation4], %s1037
          %s1039 = sand.u32 %s115, 1
          %s1040 = smul.addr %s1039, 32
          %s1041 = scalar_lea.vmem [#allocation8], %s1040
          %1042 = dma.done %s1038, 512
        $region60: #{tpu_custom_call.1} parent=55 // pred_fallthru
          _
        // Predicated region
        $region61: #{tpu_custom_call.1} parent=55 // pred_check
          %p1043 = pneg %p156
        $region62: #{tpu_custom_call.1} parent=55 // pred_check_branch
          %1045 = sbr.rel (%p1043) target = $region64
        $region63: #{tpu_custom_call.1} parent=55 // pred_region
          %s1046 = sand.u32 %s141, 1
          %s1047 = scalar_lea.sflag [#allocation10], %s1046
          %s1048 = sand.u32 %s141, 1
          %s1049 = smul.addr %s1048, 32
          %s1050 = scalar_lea.vmem [#allocation9], %s1049
          %1051 = dma.done %s1047, 512
        $region64: #{tpu_custom_call.1} parent=55 // pred_fallthru
          _
      $region56: #{tpu_custom_call.1} parent=5 // pred_fallthru
        _
    $region6: #{tpu_custom_call.1} parent=1 // loop_footer
      %s27 = sadd.s32 1, %s23
    $region7: #{tpu_custom_call.1} parent=1 // loop_footer_branch
      %22 = sbr.rel target = $region3
    $region8: #{tpu_custom_call.1} parent=1 // loop_exit
      _
    %1052 = vsyncpa [#allocation3], 1
    %s1053 = scalar_lea.sflag [#allocation3], 1
    %1054 = vsyncpa %s1053, 1
    %1055 = vsyncpa [#allocation6], 1
    %s1056 = scalar_lea.sflag [#allocation6], 1
    %1057 = vsyncpa %s1056, 1
    %1058 = vsyncpa [#allocation4], 1
    %s1059 = scalar_lea.sflag [#allocation4], 1
    %1060 = vsyncpa %s1059, 1
    %1061 = vsyncpa [#allocation10], 1
    %s1062 = scalar_lea.sflag [#allocation10], 1
    %1063 = vsyncpa %s1062, 1

</llo_original>
